<compile_context>
chip_gen: v7x
topology: tpu7x:2x2x1
jax: 0.10.0
libtpu: 0.0.40
codegen_flags: <defaults>
</compile_context>

<pallas_src>
import functools
import numpy as np
import jax
import jax.numpy as jnp
from jax.experimental import pallas as pl
from jax.experimental.pallas import tpu as pltpu

HIDDEN = 32
BSIZE = 2
PLM_LEN = 24

# Tile sizes for the pooling matmul.
#   TM = 256 keeps >=2 'parallel' M blocks (v7x megacore) once M > 256 while
#   staying lane-dense (multiple of 128).
#   TK = 2048 reduction chunk: per-step VMEM =
#     gw (tile_k,1)->(tile_k,128) i32 ~1 MiB + xT (H,tile_k) + out/acc (H,tile_m)
#   which stays well inside the 32 MiB scoped limit we request (safe on
#   v5e/v6e/v7x) even for realistic hidden sizes.
TM = 256
TK = 2048

# Below this padded M*K the XLA segment_sum bypass is used (grid would be 1x1).
_SMALL_MK = 512 * 2048


def _round_up(a, b):
    return (a + b - 1) // b * b


def _pad_dim(n, tile, align):
    """Padded extent: tile-aligned when the dim must be tiled, else align-aligned."""
    return _round_up(n, align) if n <= tile else _round_up(n, tile)


# ---------------------------------------------------------------------------
# Pallas kernel: pooled^T = X^T @ W^T, with the binary one-hot W^T tile built
# in VMEM from the word-id vector; 1/len applied at finalize.
# ---------------------------------------------------------------------------
def _make_pool_kernel(tile_m, tile_k):
    def kernel(gw_ref, inv_ref, xT_ref, o_ref, acc_ref):
        i = pl.program_id(0)            # M block ('parallel')
        k = pl.program_id(1)            # K block ('arbitrary' reduction)

        @pl.when(k == 0)
        def _():
            acc_ref[...] = jnp.zeros_like(acc_ref)

        # Binary one-hot W^T tile (tile_k, tile_m): W^T[p, w] = 1 iff flat PLM
        # position p belongs to (global) word i*tile_m + w.  gw block is
        # (tile_k, 1) so the data-dependent values already sit on the sublane
        # axis; the compare is a cheap lane broadcast, no in-kernel transpose.
        col = jax.lax.broadcasted_iota(jnp.int32, (tile_k, tile_m), 1)
        wT = (gw_ref[...] == col + i * tile_m).astype(jnp.float32)

        # (H, tile_k) @ (tile_k, tile_m) -> (H, tile_m): lane-dense output,
        # MXU N dimension = tile_m.
        acc_ref[...] += jnp.dot(xT_ref[...], wT,
                                preferred_element_type=jnp.float32)

        @pl.when(k == pl.num_programs(1) - 1)
        def _():
            # Sum-then-divide (matches the reference mean-pooling order).
            o_ref[...] = (acc_ref[...] * inv_ref[...]).astype(o_ref.dtype)

    return kernel


def weighted_pool_matmul(gw_col, inv_row, xT):
    """gw_col: (Kp, 1) int32 word id per flat PLM position (-1 = unused).
    inv_row: (1, Mp) f32 per-word 1/num_subwords.
    xT:      (H, Kp) f32 transposed PLM activations.
    Returns pooled^T: (H, Mp) f32."""
    Kp, _ = gw_col.shape
    H, Kp2 = xT.shape
    _, Mp = inv_row.shape
    assert Kp == Kp2
    tile_m = Mp if Mp <= TM else TM
    tile_k = Kp if Kp <= TK else TK
    assert Mp % tile_m == 0 and Kp % tile_k == 0
    grid = (Mp // tile_m, Kp // tile_k)

    return pl.pallas_call(
        _make_pool_kernel(tile_m, tile_k),
        out_shape=jax.ShapeDtypeStruct((H, Mp), jnp.float32),
        grid=grid,
        in_specs=[
            pl.BlockSpec((tile_k, 1), lambda i, k: (k, 0)),      # gw
            pl.BlockSpec((1, tile_m), lambda i, k: (0, i)),      # 1/len
            pl.BlockSpec((H, tile_k), lambda i, k: (0, k)),      # X^T
        ],
        out_specs=pl.BlockSpec((H, tile_m), lambda i, k: (0, i)),
        scratch_shapes=[pltpu.VMEM((H, tile_m), jnp.float32)],
        compiler_params=pltpu.CompilerParams(
            dimension_semantics=("parallel", "arbitrary"),
            vmem_limit_bytes=32 << 20),
    )(gw_col, inv_row, xT)


# ---------------------------------------------------------------------------
# Word-id map construction (plain JAX; metadata-sized index bookkeeping).
# masked_select / masked_scatter_ pair the k-th True PLM position with the
# k-th True subword slot; a subword slot's row index is its word id.
# ---------------------------------------------------------------------------
def _word_map_for_group(plm_mask, subword_mask, word_offset):
    fpm = plm_mask.reshape(-1)
    fsm = subword_mask.reshape(-1)
    n_words, max_sw = subword_mask.shape
    R = n_words * max_sw
    dst_rank = jnp.cumsum(fsm.astype(jnp.int32)) - 1
    word_ids = jnp.arange(R, dtype=jnp.int32) // max_sw
    word_of_rank = jnp.full((R,), -1, jnp.int32).at[
        jnp.where(fsm, dst_rank, R)].set(word_ids, mode="drop")
    src_rank = jnp.clip(jnp.cumsum(fpm.astype(jnp.int32)) - 1, 0, R - 1)
    w = word_of_rank[src_rank]
    gw = jnp.where(fpm & (w >= 0), w + word_offset, -1)          # (P,)
    # Empty words get 1/1 against a zero sum (PyTorch would NaN there).
    inv_len = 1.0 / jnp.clip(subword_mask.sum(axis=1).astype(jnp.float32),
                             1.0, None)
    return gw, inv_len


def build_word_map(batch, m_pad, k_pad, offsets):
    gw_q, il_q = _word_map_for_group(batch["question_mask_plm"],
                                     batch["question_subword_mask"], offsets[0])
    gw_t, il_t = _word_map_for_group(batch["table_mask_plm"],
                                     batch["table_subword_mask"], offsets[1])
    gw_c, il_c = _word_map_for_group(batch["column_mask_plm"],
                                     batch["column_subword_mask"], offsets[2])
    # question / table / column PLM positions are disjoint in this model.
    gw = jnp.where(gw_q >= 0, gw_q, jnp.where(gw_t >= 0, gw_t, gw_c))   # (P,)
    gw = jnp.pad(gw, (0, k_pad - gw.shape[0]), constant_values=-1)      # (Kp,)
    inv_len = jnp.zeros((m_pad,), jnp.float32)
    inv_len = inv_len.at[offsets[0] + jnp.arange(il_q.shape[0])].set(il_q)
    inv_len = inv_len.at[offsets[1] + jnp.arange(il_t.shape[0])].set(il_t)
    inv_len = inv_len.at[offsets[2] + jnp.arange(il_c.shape[0])].set(il_c)
    return gw, inv_len


# ---------------------------------------------------------------------------
# SubwordAggregation forward
# ---------------------------------------------------------------------------
def subword_aggregation_forward(inputs, batch, force_pallas=False):
    H = inputs.shape[-1]
    B, L = batch["question_mask_plm"].shape
    P = B * L
    nq = batch["question_subword_mask"].shape[0]
    nt = batch["table_subword_mask"].shape[0]
    nc = batch["column_subword_mask"].shape[0]
    M = nq + nt + nc
    m_pad = _pad_dim(M, TM, 128)     # lane axis of the (H, Mp) output
    k_pad = _pad_dim(P, TK, 128)

    gw, inv_len = build_word_map(batch, m_pad, k_pad, (0, nq, nq + nt))
    X = inputs.reshape(P, H).astype(jnp.float32)

    if force_pallas or m_pad * k_pad > _SMALL_MK:
        xT = jnp.pad(X, ((0, k_pad - P), (0, 0))).T              # (H, Kp)
        pooledT = weighted_pool_matmul(gw.reshape(k_pad, 1),
                                       inv_len.reshape(1, m_pad), xT)
    else:
        # Small-problem bypass: the Pallas grid would be (1, 1); a plain
        # segment_sum avoids the launch + padding overhead.
        seg = jnp.where(gw[:P] >= 0, gw[:P], M)                  # M = drop bucket
        sums = jax.ops.segment_sum(X, seg, num_segments=M + 1)[:M]
        pooledT = (sums * inv_len[:M, None]).T                   # (H, M)

    qT = pooledT[:, :nq]
    tT = pooledT[:, nq:nq + nt]
    cT = pooledT[:, nq + nt:nq + nt + nc]

    def scatter_words(pooledT_group, dst_mask):
        # masked_scatter_ with an all-selected source == rank gather + mask.
        # Consumes the pooled words transposed (H, n) straight from the kernel.
        n = pooledT_group.shape[1]
        fdm = dst_mask.reshape(-1)
        rank = jnp.clip(jnp.cumsum(fdm.astype(jnp.int32)) - 1, 0, n - 1)
        gathered = jnp.take(pooledT_group, rank, axis=1)          # (H, D)
        out = jnp.where(fdm[None, :], gathered, 0.0)              # (H, D)
        return out.T.reshape(dst_mask.shape + (out.shape[0],))

    # TODO(synk): the data-dependent rank bookkeeping (word-id map above and
    # these rank-gather scatters) stays in plain JAX/XLA; only the segment-mean
    # reduction runs in the Pallas MXU kernel.
    new_questions = scatter_words(qT, batch["question_mask"])
    new_tables = scatter_words(tT, batch["table_word_mask"])
    new_columns = scatter_words(cT, batch["column_word_mask"])
    new_tables_batch = scatter_words(tT, batch["table_total_mask"])
    new_columns_batch = scatter_words(cT, batch["column_total_mask"])
    return (new_questions, new_tables, new_columns,
            new_tables_batch, new_columns_batch)


# ---------------------------------------------------------------------------
# Pure-JAX reference mirroring the PyTorch module (for validation only)
# ---------------------------------------------------------------------------
def _masked_repack_ref(src_vals, src_mask, dst_shape, dst_mask):
    H = src_vals.shape[-1]
    flat_src = src_vals.reshape(-1, H)
    fsm = src_mask.reshape(-1)
    D = int(np.prod(dst_shape[:-1]))
    src_rank = jnp.cumsum(fsm.astype(jnp.int32)) - 1
    idx = jnp.where(fsm, src_rank, D)
    packed = jnp.zeros((D, H), src_vals.dtype).at[idx].set(flat_src, mode="drop")
    fdm = dst_mask.reshape(-1)
    dst_rank = jnp.clip(jnp.cumsum(fdm.astype(jnp.int32)) - 1, 0, D - 1)
    out = jnp.where(fdm[:, None], packed[dst_rank],
                    jnp.zeros((), src_vals.dtype))
    return out.reshape(dst_shape)


def reference_forward(inputs, batch):
    H = inputs.shape[-1]

    def pool(plm_mask, subword_mask):
        packed = _masked_repack_ref(inputs, plm_mask,
                                    subword_mask.shape + (H,), subword_mask)
        mf = subword_mask.astype(jnp.float32)[..., None]
        return (packed * mf).sum(axis=1) / jnp.clip(mf.sum(axis=1), 1.0, None)

    q = pool(batch["question_mask_plm"], batch["question_subword_mask"])
    t = pool(batch["table_mask_plm"], batch["table_subword_mask"])
    c = pool(batch["column_mask_plm"], batch["column_subword_mask"])

    def scat(x, m):
        return _masked_repack_ref(x, jnp.ones((x.shape[0],), bool),
                                  m.shape + (H,), m)

    return (scat(q, batch["question_mask"]), scat(t, batch["table_word_mask"]),
            scat(c, batch["column_word_mask"]),
            scat(t, batch["table_total_mask"]),
            scat(c, batch["column_total_mask"]))


# ---------------------------------------------------------------------------
# Synthetic deterministic batch construction
# ---------------------------------------------------------------------------
def lens_to_mask(lens, max_len):
    lens = np.asarray(lens)
    return np.arange(max_len)[None, :] < lens[:, None]


def build_batch():
    # question: ex0 word-subword-lens [2,1,3], ex1 [1,2]
    q_sub_lens = [2, 1, 3, 1, 2]
    q_word_lens = [3, 2]
    # tables: ex0 table0 words [2,1], table1 [2]; ex1 table0 [1,3]
    t_sub_lens = [2, 1, 2, 1, 3]
    t_word_per_table = [2, 1, 2]
    t_words_per_ex = [3, 2]
    # columns: ex0 col0 [1,2], col1 [3]; ex1 col0 [2], col1 [1,2]
    c_sub_lens = [1, 2, 3, 2, 1, 2]
    c_word_per_col = [2, 1, 1, 2]
    c_words_per_ex = [3, 3]

    q_plm = np.zeros((BSIZE, PLM_LEN), dtype=bool)
    t_plm = np.zeros((BSIZE, PLM_LEN), dtype=bool)
    c_plm = np.zeros((BSIZE, PLM_LEN), dtype=bool)
    q_plm[0, 1:7] = True;  t_plm[0, 8:13] = True;  c_plm[0, 13:19] = True
    q_plm[1, 1:4] = True;  t_plm[1, 5:9] = True;   c_plm[1, 9:14] = True

    return {
        "question_mask_plm": jnp.asarray(q_plm),
        "table_mask_plm": jnp.asarray(t_plm),
        "column_mask_plm": jnp.asarray(c_plm),
        "question_subword_mask": jnp.asarray(lens_to_mask(q_sub_lens, 3)),
        "table_subword_mask": jnp.asarray(lens_to_mask(t_sub_lens, 3)),
        "column_subword_mask": jnp.asarray(lens_to_mask(c_sub_lens, 3)),
        "question_mask": jnp.asarray(lens_to_mask(q_word_lens, 3)),
        "table_word_mask": jnp.asarray(lens_to_mask(t_word_per_table, 2)),
        "column_word_mask": jnp.asarray(lens_to_mask(c_word_per_col, 2)),
        "table_total_mask": jnp.asarray(lens_to_mask(t_words_per_ex, 3)),
        "column_total_mask": jnp.asarray(lens_to_mask(c_words_per_ex, 3)),
    }


if __name__ == "__main__":
    key = jax.random.PRNGKey(0)
    inputs = jax.random.normal(key, (BSIZE, PLM_LEN, HIDDEN), dtype=jnp.float32)
    batch = build_batch()

    # Force the Pallas path so the kernel actually compiles + runs at demo size.
    fwd = jax.jit(functools.partial(subword_aggregation_forward,
                                    force_pallas=True))
    outs = jax.block_until_ready(fwd(inputs, batch))

    expected_shapes = [
        (BSIZE, 3, HIDDEN),   # new_questions
        (3, 2, HIDDEN),       # new_tables       (num_tables, max_table_word_len, H)
        (4, 2, HIDDEN),       # new_columns      (num_columns, max_column_word_len, H)
        (BSIZE, 3, HIDDEN),   # new_tables_batch
        (BSIZE, 3, HIDDEN),   # new_columns_batch
    ]
    assert [tuple(o.shape) for o in outs] == expected_shapes

    refs = reference_forward(inputs, batch)
    for got, ref in zip(outs, refs):
        assert np.allclose(np.asarray(got), np.asarray(ref),
                           atol=1e-4, rtol=1e-4)

    # The XLA small-problem bypass path must agree too.
    outs_small = jax.block_until_ready(
        jax.jit(subword_aggregation_forward)(inputs, batch))
    for got, ref in zip(outs_small, refs):
        assert np.allclose(np.asarray(got), np.asarray(ref),
                           atol=1e-4, rtol=1e-4)

    print("KERNEL_OK")
</pallas_src>

<mosaic_0001>
module attributes {stable_mosaic.version = 11 : i64} {
  func.func @kernel(%arg0: i32, %arg1: i32, %arg2: memref<128x1xi32, #tpu.memory_space<vmem>>, %arg3: memref<1x128xf32, #tpu.memory_space<vmem>>, %arg4: memref<32x128xf32, #tpu.memory_space<vmem>>, %arg5: memref<32x128xf32, #tpu.memory_space<vmem>>, %arg6: memref<32x128xf32, #tpu.memory_space<vmem>>) attributes {dimension_semantics = [#tpu.dimension_semantics<parallel>, #tpu.dimension_semantics<arbitrary>], iteration_bounds = array<i64: 1, 1>, scalar_prefetch = 0 : i64, scratch_operands = 1 : i64, tpu.core_type = #tpu.core_type<tc>, window_params = [{transform_indices = @transform_0, window_bounds = array<i64: 128, 1>}, {transform_indices = @transform_1, window_bounds = array<i64: 1, 128>}, {transform_indices = @transform_2, window_bounds = array<i64: 32, 128>}, {transform_indices = @transform_3, window_bounds = array<i64: 32, 128>}]} {
    %c0_i32 = arith.constant 0 : i32
    %0 = arith.cmpi eq, %arg1, %c0_i32 : i32
    %1 = arith.extui %0 : i1 to i32
    %c0_i32_0 = arith.constant 0 : i32
    %2 = arith.cmpi ne, %1, %c0_i32_0 : i32
    scf.if %2 {
      %cst_10 = arith.constant 0.000000e+00 : f32
      %20 = vector.broadcast %cst_10 : f32 to vector<32x128xf32>
      %c0_11 = arith.constant 0 : index
      %c0_12 = arith.constant 0 : index
      %21 = vector.load %arg6[%c0_11, %c0_12] : memref<32x128xf32, #tpu.memory_space<vmem>>, vector<32x128xf32>
      tpu.vector_store %arg6[%c0_11, %c0_12], %20 {strides = array<i32>} : memref<32x128xf32, #tpu.memory_space<vmem>>, vector<32x128xf32>,
    } else {
    }
    %3 = tpu.iota {dimensions = array<i32: 1>} : vector<128x128xi32>
    %c0 = arith.constant 0 : index
    %c0_1 = arith.constant 0 : index
    %4 = vector.load %arg2[%c0, %c0_1] : memref<128x1xi32, #tpu.memory_space<vmem>>, vector<128x1xi32>
    %c128_i32 = arith.constant 128 : i32
    %5 = arith.muli %arg0, %c128_i32 : i32
    %6 = vector.broadcast %5 : i32 to vector<128x128xi32>
    %7 = arith.addi %3, %6 : vector<128x128xi32>
    %8 = vector.broadcast %4 : vector<128x1xi32> to vector<128x128xi32>
    %9 = arith.cmpi eq, %8, %7 : vector<128x128xi32>
    %10 = arith.extui %9 : vector<128x128xi1> to vector<128x128xi32>
    %11 = arith.sitofp %10 : vector<128x128xi32> to vector<128x128xf32>
    %c0_2 = arith.constant 0 : index
    %c0_3 = arith.constant 0 : index
    %12 = vector.load %arg6[%c0_2, %c0_3] : memref<32x128xf32, #tpu.memory_space<vmem>>, vector<32x128xf32>
    %c0_4 = arith.constant 0 : index
    %c0_5 = arith.constant 0 : index
    %13 = vector.load %arg4[%c0_4, %c0_5] : memref<32x128xf32, #tpu.memory_space<vmem>>, vector<32x128xf32>
    %cst = arith.constant dense<0.000000e+00> : vector<32x128xf32>
    %14 = tpu.matmul %13, %11, %cst {dimension_numbers = #tpu.dot_dimension_numbers<[1], [0], [0], [1], [0, 0, 1, 1], [], []>} : vector<32x128xf32>, vector<128x128xf32>, vector<32x128xf32> -> vector<32x128xf32>
    %15 = arith.addf %12, %14 : vector<32x128xf32>
    %c0_6 = arith.constant 0 : index
    %c0_7 = arith.constant 0 : index
    %16 = vector.load %arg6[%c0_6, %c0_7] : memref<32x128xf32, #tpu.memory_space<vmem>>, vector<32x128xf32>
    tpu.vector_store %arg6[%c0_6, %c0_7], %15 {strides = array<i32>} : memref<32x128xf32, #tpu.memory_space<vmem>>, vector<32x128xf32>,
    %c0_i32_8 = arith.constant 0 : i32
    %17 = arith.cmpi eq, %arg1, %c0_i32_8 : i32
    %18 = arith.extui %17 : i1 to i32
    %c0_i32_9 = arith.constant 0 : i32
    %19 = arith.cmpi ne, %18, %c0_i32_9 : i32
    scf.if %19 {
      %c0_10 = arith.constant 0 : index
      %c0_11 = arith.constant 0 : index
      %20 = vector.load %arg6[%c0_10, %c0_11] : memref<32x128xf32, #tpu.memory_space<vmem>>, vector<32x128xf32>
      %c0_12 = arith.constant 0 : index
      %c0_13 = arith.constant 0 : index
      %21 = vector.load %arg3[%c0_12, %c0_13] : memref<1x128xf32, #tpu.memory_space<vmem>>, vector<1x128xf32>
      %22 = vector.broadcast %21 : vector<1x128xf32> to vector<32x128xf32>
      %23 = arith.mulf %20, %22 : vector<32x128xf32>
      %c0_14 = arith.constant 0 : index
      %c0_15 = arith.constant 0 : index
      %24 = vector.load %arg5[%c0_14, %c0_15] : memref<32x128xf32, #tpu.memory_space<vmem>>, vector<32x128xf32>
      tpu.vector_store %arg5[%c0_14, %c0_15], %23 {strides = array<i32>} : memref<32x128xf32, #tpu.memory_space<vmem>>, vector<32x128xf32>,
    } else {
    }
    return
  }
  func.func @transform_0(%arg0: i32, %arg1: i32) -> (i32, i32) {
    %c0_i32 = arith.constant 0 : i32
    %c0_i32_0 = arith.constant 0 : i32
    return %arg1, %c0_i32 : i32, i32
  }
  func.func @transform_1(%arg0: i32, %arg1: i32) -> (i32, i32) {
    %c0_i32 = arith.constant 0 : i32
    %c0_i32_0 = arith.constant 0 : i32
    return %c0_i32, %arg0 : i32, i32
  }
  func.func @transform_2(%arg0: i32, %arg1: i32) -> (i32, i32) {
    %c0_i32 = arith.constant 0 : i32
    %c0_i32_0 = arith.constant 0 : i32
    return %c0_i32, %arg1 : i32, i32
  }
  func.func @transform_3(%arg0: i32, %arg1: i32) -> (i32, i32) {
    %c0_i32 = arith.constant 0 : i32
    %c0_i32_0 = arith.constant 0 : i32
    return %c0_i32, %arg0 : i32, i32
  }
}

</mosaic_0001>

<llo_original>
// kernel: subword_aggregation_forward.1
$region0: #{subword_aggregation_forward.1}
  #allocation0 [shape = 'u32[]', space=smem, size = 0x4, offset = 0x4, fixed_abs, tag = 'smem constant byte address 0x4 - core index']
  #allocation1 [shape = 'u32[144,128]{1,0:T(1,128)}', space=vmem, size = 0x12000, scoped, tag = 'internal scratch']
  #allocation2 [shape = 'f32[32,128]{1,0:T(8,128)}', space=vmem, size = 0x4000, scoped, tag = 'scratch operand']
  %s0 = inlined_call_operand.vmem [shape: s32[128,1], index: 0, kind: input, shape index: {}]
  %s1 = inlined_call_operand.vmem [shape: f32[1,128], index: 1, kind: input, shape index: {}]
  %s2 = inlined_call_operand.vmem [shape: f32[32,128], index: 2, kind: input, shape index: {}]
  %s3 = inlined_call_operand.vmem [shape: f32[32,128], index: 3, kind: output, shape index: {}]
  %s4 = sld [smem:[#allocation0]]
  $region30: #{subword_aggregation_forward.1} parent=0
    _
  %s6 = ssub.s32 1, %s4
  %s7 = scalar_select 0, %s6, %s4
  // Predicated region
  $region2: #{subword_aggregation_forward.1} parent=0 // pred_check
    _
  $region3: #{subword_aggregation_forward.1} parent=0 // pred_check_branch
    %9 = sbr.rel (0) target = $region5
  $region4: #{subword_aggregation_forward.1} parent=0 // pred_region
    _
  $region5: #{subword_aggregation_forward.1} parent=0 // pred_fallthru
    _
  // Predicated region
  $region6: #{subword_aggregation_forward.1} parent=0 // pred_check
    _
  $region7: #{subword_aggregation_forward.1} parent=0 // pred_check_branch
    %11 = sbr.rel (0) target = $region9
  $region8: #{subword_aggregation_forward.1} parent=0 // pred_region
    _
  $region9: #{subword_aggregation_forward.1} parent=0 // pred_fallthru
    _
  // Predicated region
  $region10: #{subword_aggregation_forward.1} parent=0 // pred_check
    _
  $region11: #{subword_aggregation_forward.1} parent=0 // pred_check_branch
    %13 = sbr.rel (0) target = $region13
  $region12: #{subword_aggregation_forward.1} parent=0 // pred_region
    _
  $region13: #{subword_aggregation_forward.1} parent=0 // pred_fallthru
    _
  %p14 = scmp.eq.s32.totalorder 0, 0
  // Predicated region
  $region14: #{subword_aggregation_forward.1} parent=0 // pred_check
    %p15 = pneg %p14
  $region15: #{subword_aggregation_forward.1} parent=0 // pred_check_branch
    %17 = sbr.rel (%p15) target = $region17
  $region16: #{subword_aggregation_forward.1} parent=0 // pred_region
    %18 = vst [vmem:[#allocation2] sm:$0xff] 0.0
    %19 = vst [vmem:[#allocation2 + $0x8] sm:$0xff] 0.0
    %20 = vst [vmem:[#allocation2 + $0x10] sm:$0xff] 0.0
    %21 = vst [vmem:[#allocation2 + $0x18] sm:$0xff] 0.0
  $region17: #{subword_aggregation_forward.1} parent=0 // pred_fallthru
    _
  %v22 = vlaneseq
  %v23 = vand.u32 %v22, 127
  %v24 = vld [vmem:[%s0] sm:$0xff]
  %v25 = vld [vmem:[%s0 + $0x8] sm:$0xff]
  %v26 = vld [vmem:[%s0 + $0x10] sm:$0xff]
  %v27 = vld [vmem:[%s0 + $0x18] sm:$0xff]
  %v28 = vld [vmem:[%s0 + $0x20] sm:$0xff]
  %v29 = vld [vmem:[%s0 + $0x28] sm:$0xff]
  %v30 = vld [vmem:[%s0 + $0x30] sm:$0xff]
  %v31 = vld [vmem:[%s0 + $0x38] sm:$0xff]
  %v32 = vld [vmem:[%s0 + $0x40] sm:$0xff]
  %v33 = vld [vmem:[%s0 + $0x48] sm:$0xff]
  %v34 = vld [vmem:[%s0 + $0x50] sm:$0xff]
  %v35 = vld [vmem:[%s0 + $0x58] sm:$0xff]
  %v36 = vld [vmem:[%s0 + $0x60] sm:$0xff]
  %v37 = vld [vmem:[%s0 + $0x68] sm:$0xff]
  %v38 = vld [vmem:[%s0 + $0x70] sm:$0xff]
  %v39 = vld [vmem:[%s0 + $0x78] sm:$0xff]
  %s40 = smul.u32 0, 128
  %v41 = vstv %s40
  %v42 = vadd.s32 %v23, %v41
  %43 = vset.pattern.permute.xlu0 0
  %44 = vperm.xlu0 %43, %v24
  %v45 = vpop.permute.xlu0 %44
  %46 = vset.pattern.permute.xlu0 0
  %47 = vperm.xlu0 %46, %v25
  %v48 = vpop.permute.xlu0 %47
  %49 = vset.pattern.permute.xlu0 0
  %50 = vperm.xlu0 %49, %v26
  %v51 = vpop.permute.xlu0 %50
  %52 = vset.pattern.permute.xlu0 0
  %53 = vperm.xlu0 %52, %v27
  %v54 = vpop.permute.xlu0 %53
  %55 = vset.pattern.permute.xlu0 0
  %56 = vperm.xlu0 %55, %v28
  %v57 = vpop.permute.xlu0 %56
  %58 = vset.pattern.permute.xlu0 0
  %59 = vperm.xlu0 %58, %v29
  %v60 = vpop.permute.xlu0 %59
  %61 = vset.pattern.permute.xlu0 0
  %62 = vperm.xlu0 %61, %v30
  %v63 = vpop.permute.xlu0 %62
  %64 = vset.pattern.permute.xlu0 0
  %65 = vperm.xlu0 %64, %v31
  %v66 = vpop.permute.xlu0 %65
  %67 = vset.pattern.permute.xlu0 0
  %68 = vperm.xlu0 %67, %v32
  %v69 = vpop.permute.xlu0 %68
  %70 = vset.pattern.permute.xlu0 0
  %71 = vperm.xlu0 %70, %v33
  %v72 = vpop.permute.xlu0 %71
  %73 = vset.pattern.permute.xlu0 0
  %74 = vperm.xlu0 %73, %v34
  %v75 = vpop.permute.xlu0 %74
  %76 = vset.pattern.permute.xlu0 0
  %77 = vperm.xlu0 %76, %v35
  %v78 = vpop.permute.xlu0 %77
  %79 = vset.pattern.permute.xlu0 0
  %80 = vperm.xlu0 %79, %v36
  %v81 = vpop.permute.xlu0 %80
  %82 = vset.pattern.permute.xlu0 0
  %83 = vperm.xlu0 %82, %v37
  %v84 = vpop.permute.xlu0 %83
  %85 = vset.pattern.permute.xlu0 0
  %86 = vperm.xlu0 %85, %v38
  %v87 = vpop.permute.xlu0 %86
  %88 = vset.pattern.permute.xlu0 0
  %89 = vperm.xlu0 %88, %v39
  %v90 = vpop.permute.xlu0 %89
  %vm91 = vcmp.eq.s32.totalorder %v45, %v42
  %vm92 = vcmp.eq.s32.totalorder %v48, %v42
  %vm93 = vcmp.eq.s32.totalorder %v51, %v42
  %vm94 = vcmp.eq.s32.totalorder %v54, %v42
  %vm95 = vcmp.eq.s32.totalorder %v57, %v42
  %vm96 = vcmp.eq.s32.totalorder %v60, %v42
  %vm97 = vcmp.eq.s32.totalorder %v63, %v42
  %vm98 = vcmp.eq.s32.totalorder %v66, %v42
  %vm99 = vcmp.eq.s32.totalorder %v69, %v42
  %vm100 = vcmp.eq.s32.totalorder %v72, %v42
  %vm101 = vcmp.eq.s32.totalorder %v75, %v42
  %vm102 = vcmp.eq.s32.totalorder %v78, %v42
  %vm103 = vcmp.eq.s32.totalorder %v81, %v42
  %vm104 = vcmp.eq.s32.totalorder %v84, %v42
  %vm105 = vcmp.eq.s32.totalorder %v87, %v42
  %vm106 = vcmp.eq.s32.totalorder %v90, %v42
  %v107 = vsel %vm91, 1, 0
  %v108 = vsel %vm92, 1, 0
  %v109 = vsel %vm93, 1, 0
  %v110 = vsel %vm94, 1, 0
  %v111 = vsel %vm95, 1, 0
  %v112 = vsel %vm96, 1, 0
  %v113 = vsel %vm97, 1, 0
  %v114 = vsel %vm98, 1, 0
  %v115 = vsel %vm99, 1, 0
  %v116 = vsel %vm100, 1, 0
  %v117 = vsel %vm101, 1, 0
  %v118 = vsel %vm102, 1, 0
  %v119 = vsel %vm103, 1, 0
  %v120 = vsel %vm104, 1, 0
  %v121 = vsel %vm105, 1, 0
  %v122 = vsel %vm106, 1, 0
  %v123 = vcvt.s32.f32 %v107
  %v124 = vcvt.s32.f32 %v108
  %v125 = vcvt.s32.f32 %v109
  %v126 = vcvt.s32.f32 %v110
  %v127 = vcvt.s32.f32 %v111
  %v128 = vcvt.s32.f32 %v112
  %v129 = vcvt.s32.f32 %v113
  %v130 = vcvt.s32.f32 %v114
  %v131 = vcvt.s32.f32 %v115
  %v132 = vcvt.s32.f32 %v116
  %v133 = vcvt.s32.f32 %v117
  %v134 = vcvt.s32.f32 %v118
  %v135 = vcvt.s32.f32 %v119
  %v136 = vcvt.s32.f32 %v120
  %v137 = vcvt.s32.f32 %v121
  %v138 = vcvt.s32.f32 %v122
  %v139 = vld [vmem:[#allocation2] sm:$0xff]
  %v140 = vld [vmem:[#allocation2 + $0x8] sm:$0xff]
  %v141 = vld [vmem:[#allocation2 + $0x10] sm:$0xff]
  %v142 = vld [vmem:[#allocation2 + $0x18] sm:$0xff]
  %v143 = vld [vmem:[%s2] sm:$0xff]
  %v144 = vld [vmem:[%s2 + $0x8] sm:$0xff]
  %v145 = vld [vmem:[%s2 + $0x10] sm:$0xff]
  %v146 = vld [vmem:[%s2 + $0x18] sm:$0xff]
  %147 = vmatprep.subr.mxu0 0.0
  %148 = vmatpush1.msra.mxu0 %v123
  %149 = vmatprep.subr.mxu0 0.0
  %150 = vmatpush1.msra.mxu0 %v124
  %151 = vmatprep.subr.mxu0 0.0
  %152 = vmatpush1.msra.mxu0 %v125
  %153 = vmatprep.subr.mxu0 0.0
  %154 = vmatpush1.msra.mxu0 %v126
  %155 = vmatprep.subr.mxu0 0.0
  %156 = vmatpush1.msra.mxu0 %v127
  %157 = vmatprep.subr.mxu0 0.0
  %158 = vmatpush1.msra.mxu0 %v128
  %159 = vmatprep.subr.mxu0 0.0
  %160 = vmatpush1.msra.mxu0 %v129
  %161 = vmatprep.subr.mxu0 0.0
  %162 = vmatpush1.msra.mxu0 %v130
  %163 = vmatprep.subr.mxu0 0.0
  %164 = vmatpush1.msra.mxu0 %v131
  %165 = vmatprep.subr.mxu0 0.0
  %166 = vmatpush1.msra.mxu0 %v132
  %167 = vmatprep.subr.mxu0 0.0
  %168 = vmatpush1.msra.mxu0 %v133
  %169 = vmatprep.subr.mxu0 0.0
  %170 = vmatpush1.msra.mxu0 %v134
  %171 = vmatprep.subr.mxu0 0.0
  %172 = vmatpush1.msra.mxu0 %v135
  %173 = vmatprep.subr.mxu0 0.0
  %174 = vmatpush1.msra.mxu0 %v136
  %175 = vmatprep.subr.mxu0 0.0
  %176 = vmatpush1.msra.mxu0 %v137
  %177 = vmatprep.subr.mxu0 0.0
  %178 = vmatpush1.msra.mxu0 %v138
  %179 = vmatprep.subr.mxu0 0.0
  %180 = vmatpush1.msra.mxu0 0.0
  %181 = vmatprep.subr.mxu0 0.0
  %182 = vmatpush1.msra.mxu0 0.0
  %183 = vmatprep.subr.mxu0 0.0
  %184 = vmatpush1.msra.mxu0 0.0
  %185 = vmatprep.subr.mxu0 0.0
  %186 = vmatpush1.msra.mxu0 0.0
  %187 = vmatprep.subr.mxu0 0.0
  %188 = vmatpush1.msra.mxu0 0.0
  %189 = vmatprep.subr.mxu0 0.0
  %190 = vmatpush1.msra.mxu0 0.0
  %191 = vmatprep.subr.mxu0 0.0
  %192 = vmatpush1.msra.mxu0 0.0
  %193 = vmatprep.subr.mxu0 0.0
  %194 = vmatpush1.msra.mxu0 0.0
  %195 = vmatprep.subr.mxu0 0.0
  %196 = vmatpush1.msra.mxu0 0.0
  %197 = vmatprep.subr.mxu0 0.0
  %198 = vmatpush1.msra.mxu0 0.0
  %199 = vmatprep.subr.mxu0 0.0
  %200 = vmatpush1.msra.mxu0 0.0
  %201 = vmatprep.subr.mxu0 0.0
  %202 = vmatpush1.msra.mxu0 0.0
  %203 = vmatprep.subr.mxu0 0.0
  %204 = vmatpush1.msra.mxu0 0.0
  %205 = vmatprep.subr.mxu0 0.0
  %206 = vmatpush1.msra.mxu0 0.0
  %207 = vmatprep.subr.mxu0 0.0
  %208 = vmatpush1.msra.mxu0 0.0
  %209 = vmatprep.subr.mxu0 0.0
  %210 = vmatpush1.msra.mxu0 0.0
  %211 = vmatprep.mubr.f32.mxu0 0.0
  %212 = vmatmul.mubr.f32.gmra.mrb[0].mxu0 %v143
  %v213 = vpop.f32.mrb[0].mxu0
  %v214 = vadd.f32 0.0, %v213
  %v215 = vpop.f32.mrb[0].mxu0
  %216 = vmatprep.mubr.f32.mxu0 0.0
  %217 = vmatmul.mubr.f32.gmra.mrb[0].mxu0 %v144
  %v218 = vpop.f32.mrb[0].mxu0
  %v219 = vadd.f32 0.0, %v218
  %v220 = vpop.f32.mrb[0].mxu0
  %221 = vmatprep.mubr.f32.mxu0 0.0
  %222 = vmatmul.mubr.f32.gmra.mrb[0].mxu0 %v145
  %v223 = vpop.f32.mrb[0].mxu0
  %v224 = vadd.f32 0.0, %v223
  %v225 = vpop.f32.mrb[0].mxu0
  %226 = vmatprep.mubr.f32.mxu0 0.0
  %227 = vmatmul.mubr.f32.gmra.mrb[0].mxu0 %v146
  %v228 = vpop.f32.mrb[0].mxu0
  %v229 = vadd.f32 0.0, %v228
  %v230 = vpop.f32.mrb[0].mxu0
  %231 = vdwg.mxu0
  %v232 = vadd.f32 %v139, %v214
  %v233 = vadd.f32 %v140, %v219
  %v234 = vadd.f32 %v141, %v224
  %v235 = vadd.f32 %v142, %v229
  %236 = vst [vmem:[#allocation2] sm:$0xff] %v232
  %237 = vst [vmem:[#allocation2 + $0x8] sm:$0xff] %v233
  %238 = vst [vmem:[#allocation2 + $0x10] sm:$0xff] %v234
  %239 = vst [vmem:[#allocation2 + $0x18] sm:$0xff] %v235
  // Predicated region
  $region18: #{subword_aggregation_forward.1} parent=0 // pred_check
    %p240 = pneg %p14
  $region19: #{subword_aggregation_forward.1} parent=0 // pred_check_branch
    %242 = sbr.rel (%p240) target = $region21
  $region20: #{subword_aggregation_forward.1} parent=0 // pred_region
    %v243 = vld [vmem:[#allocation2] sm:$0xff]
    %v244 = vld [vmem:[#allocation2 + $0x8] sm:$0xff]
    %v245 = vld [vmem:[#allocation2 + $0x10] sm:$0xff]
    %v246 = vld [vmem:[#allocation2 + $0x18] sm:$0xff]
    %v247 = vld [vmem:[%s1] sm:$0x1]
    %v249 = vlaneseq
    %v250 = vshrl.u32 %v249, 7
    %v251 = vsub.s32 0, %v250
    %v252 = vrot.slane %v247, %v251
    %v254 = vmul.f32 %v243, %v252
    %v255 = vmul.f32 %v244, %v252
    %v256 = vmul.f32 %v245, %v252
    %v257 = vmul.f32 %v246, %v252
    %258 = vst [vmem:[%s3] sm:$0xff] %v254
    %259 = vst [vmem:[%s3 + $0x8] sm:$0xff] %v255
    %260 = vst [vmem:[%s3 + $0x10] sm:$0xff] %v256
    %261 = vst [vmem:[%s3 + $0x18] sm:$0xff] %v257
  $region21: #{subword_aggregation_forward.1} parent=0 // pred_fallthru
    _
  // Predicated region
  $region22: #{subword_aggregation_forward.1} parent=0 // pred_check
    _
  $region23: #{subword_aggregation_forward.1} parent=0 // pred_check_branch
    %263 = sbr.rel (0) target = $region25
  $region24: #{subword_aggregation_forward.1} parent=0 // pred_region
    _
  $region25: #{subword_aggregation_forward.1} parent=0 // pred_fallthru
    _
  // Predicated region
  $region26: #{subword_aggregation_forward.1} parent=0 // pred_check
    _
  $region27: #{subword_aggregation_forward.1} parent=0 // pred_check_branch
    %265 = sbr.rel (0) target = $region29
  $region28: #{subword_aggregation_forward.1} parent=0 // pred_region
    _
  $region29: #{subword_aggregation_forward.1} parent=0 // pred_fallthru
    _

</llo_original>
